<compile_context>
chip_gen: v7x
topology: tpu7x:2x2x1
jax: 0.10.0
libtpu: 0.0.40
codegen_flags: <defaults>
</compile_context>

<pallas_src>
import jax
import jax.numpy as jnp
from jax.experimental import pallas as pl
from jax.experimental.pallas import tpu as pltpu


def attention_kernel(x_ref, m_ref, w_ref, b_ref, c_ref, out_ref, wts_ref):
    # x_ref  : (Bb, S, E)  input embeddings (bf16 or f32)
    # m_ref  : (Bb, S)     mask, lane-dense (S on the lane axis), f32
    # w_ref  : (E, E)      Linear weight, pre-transposed (x @ w == x @ W.T)
    # b_ref  : (1, E)      Linear bias, f32
    # c_ref  : (1, E)      context vector, f32
    # out_ref: (Bb, E)     pooled output, f32
    # wts_ref: (Bb, S)     attention weights, lane-dense, f32
    Bb, S, E = x_ref.shape
    x = x_ref[...]                                                  # (Bb, S, E)

    # hidden = tanh(Linear(input)): one flattened (Bb*S, E) @ (E, E) MXU
    # matmul with f32 accumulation, tanh in f32 on the EUP.
    h = jnp.dot(x.reshape(Bb * S, E), w_ref[...],
                preferred_element_type=jnp.float32)
    h = jnp.tanh(h + b_ref[...]).reshape(Bb, S, E)                  # (Bb, S, E) f32

    # importance = sum(hidden * context, -1), masked_fill(mask == 0, -1e9).
    # Lane reduce over E rides the XLU (hidden under the matmul).
    imp = jnp.sum(h * c_ref[...], axis=-1)                          # (Bb, S)
    imp = jnp.where(m_ref[...] == 0.0, jnp.float32(-1000000000.0), imp)

    # masked softmax over the sequence (lane) axis, exact normalization.
    mx = jnp.max(imp, axis=-1, keepdims=True)                       # (Bb, 1)
    e = jnp.exp(imp - mx)                                           # (Bb, S)
    aw = e / jnp.sum(e, axis=-1, keepdims=True)                     # (Bb, S)

    # weighted pooling of the raw embeddings over S: VPU multiply + XLU
    # sublane reduce (MXU stays free for the Linear of the next tile).
    xf = x.astype(jnp.float32)
    out_ref[...] = jnp.sum(aw[:, :, None] * xf, axis=1)             # (Bb, E)
    wts_ref[...] = aw                                               # (Bb, S)


def _physical_vmem_bytes():
    """Per-TensorCore VMEM capacity; conservative 64 MiB (v7x) fallback."""
    try:
        info = pltpu.get_tpu_info()
        v = getattr(info, "vmem_capacity_bytes", None)
        if v:
            return int(v)
    except Exception:
        pass
    return 64 * 2**20


def _pick_block_b(B, per_row_bytes, fixed_bytes, budget_bytes):
    """Largest batch tile (multiple of 8, dividing B) that fits the VMEM
    budget, preferring >= 4 grid steps so both v7x TensorCores get >= 2
    pipelined iterations."""
    margin = 4 * 2**20
    cap = max(1, (budget_bytes - fixed_bytes - margin) // per_row_bytes)
    divisors8 = [d for d in range(8, B + 1, 8) if B % d == 0]
    for min_steps in (4, 2, 1):
        fitting = [d for d in divisors8 if d <= cap and B // d >= min_steps]
        if fitting:
            return max(fitting)
    if divisors8:
        # Nothing fits the budget: take the smallest legal tile anyway.
        return min(divisors8)
    # TODO(synk): B with no multiple-of-8 divisor falls back to one full
    # block; huge S*E would additionally need flash-style S tiling.
    return B


def attention_pallas(x, mask, weight, bias, context, *, block_b=None,
                     matmul_dtype=jnp.bfloat16):
    """x: (B,S,E), mask: (B,S), weight: (E,E), bias: (E,), context: (E,).

    Returns (output (B,E) f32, attention_weights (B,S) f32)."""
    B, S, E = x.shape
    x_bytes = jnp.dtype(matmul_dtype).itemsize

    # Generation-aware VMEM budget: never exceed 75% of physical capacity.
    phys = _physical_vmem_bytes()
    budget = max(16 * 2**20, min(phys * 3 // 4, phys - 8 * 2**20))

    # Explicit per-batch-row footprint: double-buffered x tile, f32
    # in-kernel temporaries (hidden, f32 x copy, weighted product),
    # double-buffered out / wts / mask blocks.  Params counted once each
    # (double-buffered) in `fixed`.
    per_row = 2 * S * E * x_bytes + 3 * S * E * 4 + 2 * 4 * (E + 2 * S)
    fixed = 2 * E * E * x_bytes + 4 * 4 * E

    if block_b is None:
        block_b = _pick_block_b(B, per_row, fixed, budget)
    assert B % block_b == 0, (B, block_b)
    grid = (B // block_b,)

    needed = fixed + block_b * per_row + 2 * 2**20   # + compiler scratch slack
    vmem_limit = int(max(8 * 2**20, min(budget, needed + 4 * 2**20)))

    xq = x.astype(matmul_dtype)
    wq = weight.T.astype(matmul_dtype)                # Linear: x @ W.T + b
    b2 = bias.reshape(1, E).astype(jnp.float32)
    c2 = context.reshape(1, E).astype(jnp.float32)
    m2 = mask.astype(jnp.float32)

    # Advisory cost for the XLA scheduler.
    cost = pl.CostEstimate(
        flops=2 * B * S * E * E + 4 * B * S * E + 8 * B * S,
        transcendentals=B * S * E + B * S,            # tanh + exp
        bytes_accessed=x_bytes * (B * S * E + E * E)
        + 4 * (2 * E + 2 * B * S + B * E),
    )

    out, wts = pl.pallas_call(
        attention_kernel,
        out_shape=(
            jax.ShapeDtypeStruct((B, E), jnp.float32),
            jax.ShapeDtypeStruct((B, S), jnp.float32),
        ),
        grid=grid,
        in_specs=[
            pl.BlockSpec((block_b, S, E), lambda b: (b, 0, 0)),   # x
            pl.BlockSpec((block_b, S), lambda b: (b, 0)),         # mask
            pl.BlockSpec((E, E), lambda b: (0, 0)),               # W.T (resident)
            pl.BlockSpec((1, E), lambda b: (0, 0)),               # bias
            pl.BlockSpec((1, E), lambda b: (0, 0)),               # context
        ],
        out_specs=(
            pl.BlockSpec((block_b, E), lambda b: (b, 0)),         # pooled output
            pl.BlockSpec((block_b, S), lambda b: (b, 0)),         # weights
        ),
        compiler_params=pltpu.CompilerParams(
            dimension_semantics=("parallel",),
            vmem_limit_bytes=vmem_limit,
        ),
        cost_estimate=cost,
    )(xq, m2, wq, b2, c2)

    return out, wts


def attention_ref(x, mask, weight, bias, context, matmul_dtype=jnp.float32):
    """Pure-JAX reference matching the PyTorch forward.  With
    matmul_dtype=bfloat16 it mirrors the kernel's operand precision."""
    xq = x.astype(matmul_dtype)
    wq = weight.astype(matmul_dtype)
    h = jnp.tanh(jnp.einsum("bse,oe->bso", xq, wq,
                            preferred_element_type=jnp.float32) + bias)
    imp = jnp.sum(h * context, axis=-1)
    imp = jnp.where(mask == 0, -1000000000.0, imp)
    aw = jax.nn.softmax(imp, axis=-1)
    out = jnp.sum(xq.astype(jnp.float32) * aw[..., None], axis=-2)
    return out, aw


if __name__ == "__main__":
    # Small but tile-friendly shapes: 4 grid steps of 8 batch rows each,
    # flattened Linear matmul sees M = 8*16 = 128 rows, E = 128 lanes.
    B, S, E = 32, 16, 128
    key = jax.random.PRNGKey(0)
    kx, kw, kb, kc = jax.random.split(key, 4)

    x = jax.random.normal(kx, (B, S, E), dtype=jnp.float32)

    # Deterministic mask: row b has its last (b % 4) sequence positions padded.
    seq_idx = jnp.arange(S)[None, :]
    valid_len = (S - (jnp.arange(B)[:, None] % 4)).astype(jnp.int32)
    mask = (seq_idx < valid_len).astype(jnp.float32)                # (B, S)

    # Deterministic parameter init (shapes from the module's __init__).
    weight = jax.random.normal(kw, (E, E), dtype=jnp.float32) * 0.1  # nn.Linear.weight
    bias = jax.random.normal(kb, (E,), dtype=jnp.float32) * 0.1      # nn.Linear.bias
    context = jax.random.normal(kc, (E,), dtype=jnp.float32)         # nn.init.normal_

    out, wts = attention_pallas(x, mask, weight, bias, context)
    jax.block_until_ready((out, wts))

    # Primary correctness check: matched-precision reference (bf16 matmul
    # operands, everything else f32) — only reduction-order / transcendental
    # implementation differences remain.
    out_q, wts_q = attention_ref(x, mask, weight, bias, context,
                                 matmul_dtype=jnp.bfloat16)
    assert jnp.allclose(out, out_q, atol=2e-3, rtol=2e-3)
    assert jnp.allclose(wts, wts_q, atol=2e-3, rtol=2e-3)

    # Sanity check vs the full-f32 reference: the only gap is the documented
    # bf16 rounding of the Linear operands and of x in the pooling.
    out_f, wts_f = attention_ref(x, mask, weight, bias, context)
    assert jnp.allclose(out, out_f, atol=5e-2, rtol=5e-2)
    assert jnp.allclose(wts, wts_f, atol=5e-2, rtol=5e-2)

    # Exact softmax normalization (no approximate reciprocal) and zero
    # weight on masked/padded positions.
    assert jnp.allclose(jnp.sum(wts, axis=-1), 1.0, atol=1e-5)
    assert jnp.allclose(jnp.sum(wts * (1.0 - mask), axis=-1), 0.0, atol=1e-6)

    print("KERNEL_OK")
</pallas_src>

<mosaic_0001>
module attributes {stable_mosaic.version = 11 : i64} {
  func.func @attention_kernel(%arg0: i32, %arg1: memref<8x16x128xbf16, #tpu.memory_space<vmem>>, %arg2: memref<8x16xf32, #tpu.memory_space<vmem>>, %arg3: memref<128x128xbf16, #tpu.memory_space<vmem>>, %arg4: memref<1x128xf32, #tpu.memory_space<vmem>>, %arg5: memref<1x128xf32, #tpu.memory_space<vmem>>, %arg6: memref<8x128xf32, #tpu.memory_space<vmem>>, %arg7: memref<8x16xf32, #tpu.memory_space<vmem>>) attributes {dimension_semantics = [#tpu.dimension_semantics<parallel>], iteration_bounds = array<i64: 4>, scalar_prefetch = 0 : i64, scratch_operands = 0 : i64, tpu.core_type = #tpu.core_type<tc>, window_params = [{transform_indices = @transform_0, window_bounds = array<i64: 8, 16, 128>}, {transform_indices = @transform_1, window_bounds = array<i64: 8, 16>}, {pipeline_mode = #tpu.pipeline_mode<synchronous>, transform_indices = @transform_2, window_bounds = array<i64: 128, 128>}, {pipeline_mode = #tpu.pipeline_mode<synchronous>, transform_indices = @transform_3, window_bounds = array<i64: 1, 128>}, {pipeline_mode = #tpu.pipeline_mode<synchronous>, transform_indices = @transform_4, window_bounds = array<i64: 1, 128>}, {transform_indices = @transform_5, window_bounds = array<i64: 8, 128>}, {transform_indices = @transform_6, window_bounds = array<i64: 8, 16>}]} {
    %c0 = arith.constant 0 : index
    %c0_0 = arith.constant 0 : index
    %c0_1 = arith.constant 0 : index
    %0 = vector.load %arg1[%c0, %c0_0, %c0_1] : memref<8x16x128xbf16, #tpu.memory_space<vmem>>, vector<8x16x128xbf16>
    %1 = vector.shape_cast %0 : vector<8x16x128xbf16> to vector<128x128xbf16>
    %c0_2 = arith.constant 0 : index
    %c0_3 = arith.constant 0 : index
    %2 = vector.load %arg3[%c0_2, %c0_3] : memref<128x128xbf16, #tpu.memory_space<vmem>>, vector<128x128xbf16>
    %cst = arith.constant dense<0.000000e+00> : vector<128x128xf32>
    %3 = tpu.matmul %1, %2, %cst {dimension_numbers = #tpu.dot_dimension_numbers<[1], [0], [0], [1], [0, 0, 1, 1], [], []>} : vector<128x128xbf16>, vector<128x128xbf16>, vector<128x128xf32> -> vector<128x128xf32>
    %c0_4 = arith.constant 0 : index
    %c0_5 = arith.constant 0 : index
    %4 = vector.load %arg4[%c0_4, %c0_5] : memref<1x128xf32, #tpu.memory_space<vmem>>, vector<1x128xf32>
    %5 = vector.broadcast %4 : vector<1x128xf32> to vector<128x128xf32>
    %6 = arith.addf %3, %5 : vector<128x128xf32>
    %7 = math.tanh %6 : vector<128x128xf32>
    %8 = vector.shape_cast %7 : vector<128x128xf32> to vector<8x16x128xf32>
    %c0_6 = arith.constant 0 : index
    %c0_7 = arith.constant 0 : index
    %9 = vector.load %arg5[%c0_6, %c0_7] : memref<1x128xf32, #tpu.memory_space<vmem>>, vector<1x128xf32>
    %10 = vector.shape_cast %9 : vector<1x128xf32> to vector<1x1x128xf32>
    %11 = vector.broadcast %10 : vector<1x1x128xf32> to vector<8x16x128xf32>
    %12 = arith.mulf %8, %11 : vector<8x16x128xf32>
    %cst_8 = arith.constant dense<0.000000e+00> : vector<8x16xf32>
    %13 = vector.multi_reduction <add>, %12, %cst_8 [2] : vector<8x16x128xf32> to vector<8x16xf32>
    %c0_9 = arith.constant 0 : index
    %c0_10 = arith.constant 0 : index
    %14 = vector.load %arg2[%c0_9, %c0_10] : memref<8x16xf32, #tpu.memory_space<vmem>>, vector<8x16xf32>
    %cst_11 = arith.constant 0.000000e+00 : f32
    %15 = vector.broadcast %cst_11 : f32 to vector<8x16xf32>
    %16 = arith.cmpf oeq, %14, %15 : vector<8x16xf32>
    %cst_12 = arith.constant -1.000000e+09 : f32
    %17 = vector.broadcast %cst_12 : f32 to vector<8x16xf32>
    %18 = arith.select %16, %17, %13 : vector<8x16xi1>, vector<8x16xf32>
    %cst_13 = arith.constant dense<0xFF800000> : vector<8xf32>
    %19 = vector.multi_reduction <maximumf>, %18, %cst_13 [1] : vector<8x16xf32> to vector<8xf32>
    %20 = vector.shape_cast %19 : vector<8xf32> to vector<8x1xf32>
    %21 = vector.broadcast %20 : vector<8x1xf32> to vector<8x16xf32>
    %22 = arith.subf %18, %21 : vector<8x16xf32>
    %23 = math.exp %22 : vector<8x16xf32>
    %cst_14 = arith.constant dense<0.000000e+00> : vector<8xf32>
    %24 = vector.multi_reduction <add>, %23, %cst_14 [1] : vector<8x16xf32> to vector<8xf32>
    %25 = vector.shape_cast %24 : vector<8xf32> to vector<8x1xf32>
    %26 = vector.broadcast %25 : vector<8x1xf32> to vector<8x16xf32>
    %27 = arith.divf %23, %26 : vector<8x16xf32>
    %28 = arith.extf %0 : vector<8x16x128xbf16> to vector<8x16x128xf32>
    %29 = vector.shape_cast %27 : vector<8x16xf32> to vector<8x16x1xf32>
    %30 = vector.broadcast %29 : vector<8x16x1xf32> to vector<8x16x128xf32>
    %31 = arith.mulf %30, %28 : vector<8x16x128xf32>
    %cst_15 = arith.constant dense<0.000000e+00> : vector<8x128xf32>
    %32 = vector.multi_reduction <add>, %31, %cst_15 [1] : vector<8x16x128xf32> to vector<8x128xf32>
    %c0_16 = arith.constant 0 : index
    %c0_17 = arith.constant 0 : index
    %33 = vector.load %arg6[%c0_16, %c0_17] : memref<8x128xf32, #tpu.memory_space<vmem>>, vector<8x128xf32>
    tpu.vector_store %arg6[%c0_16, %c0_17], %32 {strides = array<i32>} : memref<8x128xf32, #tpu.memory_space<vmem>>, vector<8x128xf32>,
    %c0_18 = arith.constant 0 : index
    %c0_19 = arith.constant 0 : index
    %34 = vector.load %arg7[%c0_18, %c0_19] : memref<8x16xf32, #tpu.memory_space<vmem>>, vector<8x16xf32>
    tpu.vector_store %arg7[%c0_18, %c0_19], %27 {strides = array<i32>} : memref<8x16xf32, #tpu.memory_space<vmem>>, vector<8x16xf32>,
    return
  }
  func.func @transform_0(%arg0: i32) -> (i32, i32, i32) {
    %c0_i32 = arith.constant 0 : i32
    %c0_i32_0 = arith.constant 0 : i32
    %c0_i32_1 = arith.constant 0 : i32
    return %arg0, %c0_i32, %c0_i32_0 : i32, i32, i32
  }
  func.func @transform_1(%arg0: i32) -> (i32, i32) {
    %c0_i32 = arith.constant 0 : i32
    %c0_i32_0 = arith.constant 0 : i32
    return %arg0, %c0_i32 : i32, i32
  }
  func.func @transform_2(%arg0: i32) -> (i32, i32) {
    %c0_i32 = arith.constant 0 : i32
    %c0_i32_0 = arith.constant 0 : i32
    %c0_i32_1 = arith.constant 0 : i32
    return %c0_i32, %c0_i32_0 : i32, i32
  }
  func.func @transform_3(%arg0: i32) -> (i32, i32) {
    %c0_i32 = arith.constant 0 : i32
    %c0_i32_0 = arith.constant 0 : i32
    %c0_i32_1 = arith.constant 0 : i32
    return %c0_i32, %c0_i32_0 : i32, i32
  }
  func.func @transform_4(%arg0: i32) -> (i32, i32) {
    %c0_i32 = arith.constant 0 : i32
    %c0_i32_0 = arith.constant 0 : i32
    %c0_i32_1 = arith.constant 0 : i32
    return %c0_i32, %c0_i32_0 : i32, i32
  }
  func.func @transform_5(%arg0: i32) -> (i32, i32) {
    %c0_i32 = arith.constant 0 : i32
    %c0_i32_0 = arith.constant 0 : i32
    return %arg0, %c0_i32 : i32, i32
  }
  func.func @transform_6(%arg0: i32) -> (i32, i32) {
    %c0_i32 = arith.constant 0 : i32
    %c0_i32_0 = arith.constant 0 : i32
    return %arg0, %c0_i32 : i32, i32
  }
}

</mosaic_0001>

<llo_original>
// kernel: tpu_custom_call.1
$region0: #{tpu_custom_call.1}
  #allocation0 [shape = 'u32[]', space=smem, size = 0x4, offset = 0x4, fixed_abs, tag = 'smem constant byte address 0x4 - core index']
  #allocation1 [shape = 'u32[144,128]{1,0:T(1,128)}', space=vmem, size = 0x12000, scoped, tag = 'internal scratch']
  %s0 = inlined_call_operand.hbm [shape: bf16[32,16,128], index: 0, kind: input, shape index: {}]
  %s1 = inlined_call_operand.vmem [shape: f32[32,16], index: 1, kind: input, shape index: {}]
  %s2 = inlined_call_operand.hbm [shape: bf16[128,128], index: 2, kind: input, shape index: {}]
  %s3 = inlined_call_operand.vmem [shape: f32[1,128], index: 3, kind: input, shape index: {}]
  %s4 = inlined_call_operand.vmem [shape: f32[1,128], index: 4, kind: input, shape index: {}]
  %s5 = inlined_call_operand.hbm [shape: f32[32,128], index: 5, kind: output, shape index: {0}]
  %s6 = inlined_call_operand.vmem [shape: f32[32,16], index: 6, kind: output, shape index: {1}]
  %7 = xla_tuple %s5, %s6
  %s8 = sld [smem:[#allocation0]]
  $region69: #{tpu_custom_call.1} parent=0
    _
  %s10 = ssub.s32 1, %s8
  %s11 = scalar_select 0, %s10, %s8
  $region1: #{tpu_custom_call.1} parent=0
    #allocation2 [shape = 'u8[65536]{0}', space=vmem, size = 0x10000, scoped, tag = 'input window, operand 0']
    #allocation3 [shape = 's32[2]{0}', space=sflag, size = 0x8, scoped, tag = 'scoped memory for tpu_custom_call.1']
    #allocation4 [shape = 's32[2]{0}', space=sflag, size = 0x8, scoped, tag = 'scoped memory for tpu_custom_call.1']
    #allocation5 [shape = 'u8[32768]{0}', space=vmem, size = 0x8000, scoped, tag = 'input window, operand 2, single buffered']
    #allocation6 [shape = 's32[1]{0}', space=sflag, size = 0x4, scoped, tag = 'scoped memory for tpu_custom_call.1']
    #allocation7 [shape = 'u8[8192]{0}', space=vmem, size = 0x2000, scoped, tag = 'output window, operand 0']
    %12 = vsyncpa [#allocation3], 0
    %s13 = scalar_lea.sflag [#allocation3], 1
    %14 = vsyncpa %s13, 0
    %15 = vsyncpa [#allocation6], 0
    %16 = vsyncpa [#allocation4], 0
    %s17 = scalar_lea.sflag [#allocation4], 1
    %18 = vsyncpa %s17, 0
    loop: start=0, step=1, limit=6
    $region2: #{tpu_custom_call.1} parent=1 // loop_pre_header
      _
    $region3: #{tpu_custom_call.1} parent=1 // loop_header
      %s20 = sphi 0, %s24
      %p21 = scmp.ge.s32.totalorder %s20, 6
      %s30 = sphi 0, %s32
      %s33 = sphi 0, %s30
      %s34 = sphi 0, %s33
      %s50 = sphi 0, %s34
      %s56 = sphi 0, %s58
      %s59 = sphi 0, %s56
      %s60 = sphi 0, %s59
      %s76 = sphi 0, %s60
      %s80 = sphi 0, %s80
      %s82 = sphi 0, %s80
      %s83 = sphi 0, %s82
      %s97 = sphi 0, %s83
      %s101 = sphi 0, %s101
      %s103 = sphi 0, %s101
      %s104 = sphi 0, %s103
      %s118 = sphi 0, %s104
      %s122 = sphi 0, %s122
      %s124 = sphi 0, %s122
      %s125 = sphi 0, %s124
      %s139 = sphi 0, %s125
      %s145 = sphi 0, %s147
      %s148 = sphi 0, %s145
      %s149 = sphi 0, %s148
      %s165 = sphi 0, %s149
      %s171 = sphi 0, %s173
      %s174 = sphi 0, %s171
      %s175 = sphi 0, %s174
      %s191 = sphi 0, %s175
    $region4: #{tpu_custom_call.1} parent=1 // loop_header_branch
      %23 = sbr.rel (%p21) target = $region8
    $region5: #{tpu_custom_call.1} parent=1 // loop_body
      %s25 = ssub.s32 %s20, 1
      %s26 = ssub.s32 %s20, 2
      %s27 = sadd.s32 %s20, 1
      %s28 = ssub.s32 %s20, %s27
      %p29 = scmp.eq.s32.totalorder %s28, 0
      %s31 = sadd.s32 %s30, 1
      %s32 = scalar_select %p29, %s30, %s31
      %p35 = pneg %p29
      %p36 = scmp.eq.s32.totalorder %s20, 3
      %p37 = por %p35, %p36
      %p38 = scmp.ne.s32.totalorder %s30, %s33
      %p39 = scmp.eq.s32.totalorder %s20, 0
      %p40 = por %p38, %p39
      %p41 = scmp.ne.s32.totalorder %s30, %s33
      %p42 = scmp.eq.s32.totalorder %s25, 3
      %p43 = por %p41, %p42
      %p44 = scmp.ne.s32.totalorder %s33, %s34
      %p45 = scmp.eq.s32.totalorder %s25, 0
      %p46 = por %p44, %p45
      %p47 = scmp.ne.s32.totalorder %s33, %s34
      %p48 = scmp.eq.s32.totalorder %s26, 3
      %p49 = por %p47, %p48
      %p51 = scmp.ne.s32.totalorder %s34, %s50
      %p52 = scmp.eq.s32.totalorder %s26, 0
      %p53 = por %p51, %p52
      %s54 = ssub.s32 %s20, %s27
      %p55 = scmp.eq.s32.totalorder %s54, 0
      %s57 = sadd.s32 %s56, 1
      %s58 = scalar_select %p55, %s56, %s57
      %p61 = pneg %p55
      %p62 = scmp.eq.s32.totalorder %s20, 3
      %p63 = por %p61, %p62
      %p64 = scmp.ne.s32.totalorder %s56, %s59
      %p65 = scmp.eq.s32.totalorder %s20, 0
      %p66 = por %p64, %p65
      %p67 = scmp.ne.s32.totalorder %s56, %s59
      %p68 = scmp.eq.s32.totalorder %s25, 3
      %p69 = por %p67, %p68
      %p70 = scmp.ne.s32.totalorder %s59, %s60
      %p71 = scmp.eq.s32.totalorder %s25, 0
      %p72 = por %p70, %p71
      %p73 = scmp.ne.s32.totalorder %s59, %s60
      %p74 = scmp.eq.s32.totalorder %s26, 3
      %p75 = por %p73, %p74
      %p77 = scmp.ne.s32.totalorder %s60, %s76
      %p78 = scmp.eq.s32.totalorder %s26, 0
      %p79 = por %p77, %p78
      %s81 = sadd.s32 %s80, 1
      %p84 = scmp.eq.s32.totalorder %s20, 3
      %p85 = scmp.ne.s32.totalorder %s80, %s82
      %p86 = scmp.eq.s32.totalorder %s20, 0
      %p87 = por %p85, %p86
      %p88 = scmp.ne.s32.totalorder %s80, %s82
      %p89 = scmp.eq.s32.totalorder %s25, 3
      %p90 = por %p88, %p89
      %p91 = scmp.ne.s32.totalorder %s82, %s83
      %p92 = scmp.eq.s32.totalorder %s25, 0
      %p93 = por %p91, %p92
      %p94 = scmp.ne.s32.totalorder %s82, %s83
      %p95 = scmp.eq.s32.totalorder %s26, 3
      %p96 = por %p94, %p95
      %p98 = scmp.ne.s32.totalorder %s83, %s97
      %p99 = scmp.eq.s32.totalorder %s26, 0
      %p100 = por %p98, %p99
      %s102 = sadd.s32 %s101, 1
      %p105 = scmp.eq.s32.totalorder %s20, 3
      %p106 = scmp.ne.s32.totalorder %s101, %s103
      %p107 = scmp.eq.s32.totalorder %s20, 0
      %p108 = por %p106, %p107
      %p109 = scmp.ne.s32.totalorder %s101, %s103
      %p110 = scmp.eq.s32.totalorder %s25, 3
      %p111 = por %p109, %p110
      %p112 = scmp.ne.s32.totalorder %s103, %s104
      %p113 = scmp.eq.s32.totalorder %s25, 0
      %p114 = por %p112, %p113
      %p115 = scmp.ne.s32.totalorder %s103, %s104
      %p116 = scmp.eq.s32.totalorder %s26, 3
      %p117 = por %p115, %p116
      %p119 = scmp.ne.s32.totalorder %s104, %s118
      %p120 = scmp.eq.s32.totalorder %s26, 0
      %p121 = por %p119, %p120
      %s123 = sadd.s32 %s122, 1
      %p126 = scmp.eq.s32.totalorder %s20, 3
      %p127 = scmp.ne.s32.totalorder %s122, %s124
      %p128 = scmp.eq.s32.totalorder %s20, 0
      %p129 = por %p127, %p128
      %p130 = scmp.ne.s32.totalorder %s122, %s124
      %p131 = scmp.eq.s32.totalorder %s25, 3
      %p132 = por %p130, %p131
      %p133 = scmp.ne.s32.totalorder %s124, %s125
      %p134 = scmp.eq.s32.totalorder %s25, 0
      %p135 = por %p133, %p134
      %p136 = scmp.ne.s32.totalorder %s124, %s125
      %p137 = scmp.eq.s32.totalorder %s26, 3
      %p138 = por %p136, %p137
      %p140 = scmp.ne.s32.totalorder %s125, %s139
      %p141 = scmp.eq.s32.totalorder %s26, 0
      %p142 = por %p140, %p141
      %s143 = ssub.s32 %s20, %s27
      %p144 = scmp.eq.s32.totalorder %s143, 0
      %s146 = sadd.s32 %s145, 1
      %s147 = scalar_select %p144, %s145, %s146
      %p150 = pneg %p144
      %p151 = scmp.eq.s32.totalorder %s20, 3
      %p152 = por %p150, %p151
      %p153 = scmp.ne.s32.totalorder %s145, %s148
      %p154 = scmp.eq.s32.totalorder %s20, 0
      %p155 = por %p153, %p154
      %p156 = scmp.ne.s32.totalorder %s145, %s148
      %p157 = scmp.eq.s32.totalorder %s25, 3
      %p158 = por %p156, %p157
      %p159 = scmp.ne.s32.totalorder %s148, %s149
      %p160 = scmp.eq.s32.totalorder %s25, 0
      %p161 = por %p159, %p160
      %p162 = scmp.ne.s32.totalorder %s148, %s149
      %p163 = scmp.eq.s32.totalorder %s26, 3
      %p164 = por %p162, %p163
      %p166 = scmp.ne.s32.totalorder %s149, %s165
      %p167 = scmp.eq.s32.totalorder %s26, 0
      %p168 = por %p166, %p167
      %s169 = ssub.s32 %s20, %s27
      %p170 = scmp.eq.s32.totalorder %s169, 0
      %s172 = sadd.s32 %s171, 1
      %s173 = scalar_select %p170, %s171, %s172
      %p176 = pneg %p170
      %p177 = scmp.eq.s32.totalorder %s20, 3
      %p178 = por %p176, %p177
      %p179 = scmp.ne.s32.totalorder %s171, %s174
      %p180 = scmp.eq.s32.totalorder %s20, 0
      %p181 = por %p179, %p180
      %p182 = scmp.ne.s32.totalorder %s171, %s174
      %p183 = scmp.eq.s32.totalorder %s25, 3
      %p184 = por %p182, %p183
      %p185 = scmp.ne.s32.totalorder %s174, %s175
      %p186 = scmp.eq.s32.totalorder %s25, 0
      %p187 = por %p185, %p186
      %p188 = scmp.ne.s32.totalorder %s174, %s175
      %p189 = scmp.eq.s32.totalorder %s26, 3
      %p190 = por %p188, %p189
      %p192 = scmp.ne.s32.totalorder %s175, %s191
      %p193 = scmp.eq.s32.totalorder %s26, 0
      %p194 = por %p192, %p193
      %p195 = scmp.le.s32.totalorder 1, %s20
      %p196 = scmp.lt.s32.totalorder %s20, 5
      %p197 = pnand %p195, %p196
      %p198 = pneg %p197
      // Predicated region
      $region9: #{tpu_custom_call.1} parent=5 // pred_check
        _
      $region10: #{tpu_custom_call.1} parent=5 // pred_check_branch
        %200 = sbr.rel (%p197) target = $region12
      $region11: #{tpu_custom_call.1} parent=5 // pred_region
        %s201 = ssub.s32 %s20, 1
        // Predicated region
        $region13: #{tpu_custom_call.1} parent=11 // pred_check
          %p202 = pneg %p93
        $region14: #{tpu_custom_call.1} parent=11 // pred_check_branch
          %204 = sbr.rel (%p202) target = $region16
        $region15: #{tpu_custom_call.1} parent=11 // pred_region
          %s206 = ssub.s32 1024, 1024
          %207 = vsyncadd [#allocation6], %s206
          %s208 = sshll.u32 [#allocation5], 4
          %s209 = int_to_ptr.vmem [resolvable:$true] %s208
          %214 = dma.hbm_to_vmem [thread:$0]  %s2, 1024, %s209, [#allocation6], 64, 64, 4
        $region16: #{tpu_custom_call.1} parent=11 // pred_fallthru
          _
        // Predicated region
        $region17: #{tpu_custom_call.1} parent=11 // pred_check
          %p215 = pneg %p114
        $region18: #{tpu_custom_call.1} parent=11 // pred_check_branch
          %217 = sbr.rel (%p215) target = $region20
        $region19: #{tpu_custom_call.1} parent=11 // pred_region
          _
        $region20: #{tpu_custom_call.1} parent=11 // pred_fallthru
          _
        // Predicated region
        $region21: #{tpu_custom_call.1} parent=11 // pred_check
          %p218 = pneg %p135
        $region22: #{tpu_custom_call.1} parent=11 // pred_check_branch
          %220 = sbr.rel (%p218) target = $region24
        $region23: #{tpu_custom_call.1} parent=11 // pred_region
          _
        $region24: #{tpu_custom_call.1} parent=11 // pred_fallthru
          _
      $region12: #{tpu_custom_call.1} parent=5 // pred_fallthru
        _
      %p221 = scmp.lt.s32.totalorder %s20, 4
      // Predicated region
      $region25: #{tpu_custom_call.1} parent=5 // pred_check
        %p222 = pneg %p221
      $region26: #{tpu_custom_call.1} parent=5 // pred_check_branch
        %224 = sbr.rel (%p222) target = $region28
      $region27: #{tpu_custom_call.1} parent=5 // pred_region
        // Predicated region
        $region29: #{tpu_custom_call.1} parent=27 // pred_check
          %p225 = pneg %p40
        $region30: #{tpu_custom_call.1} parent=27 // pred_check_branch
          %227 = sbr.rel (%p225) target = $region32
        $region31: #{tpu_custom_call.1} parent=27 // pred_region
          %s228 = sand.u32 %s30, 1
          %s229 = scalar_lea.sflag [#allocation3], %s228
          %s230 = sand.u32 %s30, 1
          %s231 = smul.addr %s230, 64
          %s232 = scalar_lea.vmem [#allocation2], %s231
          %s233 = smul.u32 8, %s20
          %s235 = ssub.s32 1024, 1024
          %236 = vsyncadd %s229, %s235
          %s237 = smul.addr %s233, 2
          %s238 = smul.addr %s237, 64
          %s239 = scalar_lea.hbm %s0, %s238
          %s240 = sshll.u32 %s232, 4
          %s241 = int_to_ptr.vmem [resolvable:$true] %s240
          %246 = dma.hbm_to_vmem [thread:$0]  %s239, 1024, %s241, %s229, 64, 64, 4
        $region32: #{tpu_custom_call.1} parent=27 // pred_fallthru
          _
        // Predicated region
        $region33: #{tpu_custom_call.1} parent=27 // pred_check
          %p247 = pneg %p66
        $region34: #{tpu_custom_call.1} parent=27 // pred_check_branch
          %249 = sbr.rel (%p247) target = $region36
        $region35: #{tpu_custom_call.1} parent=27 // pred_region
          %p250 = scmp.lt.s32.totalorder %s20, 3
          %s251 = scalar_select %p250, %s20, 3
          %s252 = smul.addr %s251, 8
          %s253 = scalar_lea.vmem %s1, %s252
        $region36: #{tpu_custom_call.1} parent=27 // pred_fallthru
          _
      $region28: #{tpu_custom_call.1} parent=5 // pred_fallthru
        _
      %p254 = scmp.le.s32.totalorder 1, %s20
      %p255 = scmp.lt.s32.totalorder %s20, 5
      %p256 = pnand %p254, %p255
      %p257 = pneg %p256
      // Predicated region
      $region37: #{tpu_custom_call.1} parent=5 // pred_check
        _
      $region38: #{tpu_custom_call.1} parent=5 // pred_check_branch
        %259 = sbr.rel (%p256) target = $region40
      $region39: #{tpu_custom_call.1} parent=5 // pred_region
        %s260 = ssub.s32 %s20, 1
        %s261 = sand.u32 %s33, 1
        %s262 = scalar_lea.sflag [#allocation3], %s261
        %s263 = sand.u32 %s33, 1
        %s264 = smul.addr %s263, 64
        %s265 = scalar_lea.vmem [#allocation2], %s264
        // Predicated region
        $region41: #{tpu_custom_call.1} parent=39 // pred_check
          %p266 = pneg %p46
        $region42: #{tpu_custom_call.1} parent=39 // pred_check_branch
          %268 = sbr.rel (%p266) target = $region44
        $region43: #{tpu_custom_call.1} parent=39 // pred_region
          %269 = dma.done %s262, 1024
        $region44: #{tpu_custom_call.1} parent=39 // pred_fallthru
          _
        // Predicated region
        $region45: #{tpu_custom_call.1} parent=39 // pred_check
          %p270 = pneg %p93
        $region46: #{tpu_custom_call.1} parent=39 // pred_check_branch
          %272 = sbr.rel (%p270) target = $region48
        $region47: #{tpu_custom_call.1} parent=39 // pred_region
          %273 = dma.done [#allocation6], 1024
        $region48: #{tpu_custom_call.1} parent=39 // pred_fallthru
          _
        %s274 = sand.u32 %s33, 1
        %s275 = scalar_lea.sflag [#allocation3], %s274
        %s276 = sand.u32 %s33, 1
        %s277 = smul.addr %s276, 64
        %s278 = scalar_lea.vmem [#allocation2], %s277
        %p279 = pneg %p46
        %p280 = pneg %p43
        %p281 = scmp.lt.s32.totalorder %s25, 3
        %s282 = scalar_select %p281, %s25, 3
        %s283 = smul.addr %s282, 8
        %s284 = scalar_lea.vmem %s1, %s283
        %p285 = pneg %p72
        %p286 = pneg %p69
        %p287 = pneg %p93
        %p288 = pneg %p90
        %p289 = pneg %p114
        %p290 = pneg %p111
        %p291 = pneg %p135
        %p292 = pneg %p132
        %p293 = pneg %p161
        %p294 = pneg %p158
        %s295 = sand.u32 %s148, 1
        %s296 = scalar_lea.sflag [#allocation4], %s295
        %s297 = sand.u32 %s148, 1
        %s298 = smul.addr %s297, 8
        %s299 = scalar_lea.vmem [#allocation7], %s298
        %p300 = pneg %p187
        %p301 = pneg %p184
        %p302 = scmp.lt.s32.totalorder %s25, 3
        %s303 = scalar_select %p302, %s25, 3
        %s304 = smul.addr %s303, 8
        %s305 = scalar_lea.vmem %s6, %s304
        %s306 = smul.u32 8, %s25
        %p307 = scmp.lt.s32.totalorder %s25, 3
        %s308 = scalar_select %p307, %s25, 3
        %s309 = smul.addr %s308, 8
        %s310 = scalar_lea.vmem %s1, %s309
        %p311 = scmp.lt.s32.totalorder %s25, 3
        %s312 = scalar_select %p311, %s25, 3
        %s313 = smul.addr %s312, 8
        %s314 = scalar_lea.vmem %s6, %s313
        %v316 = vld [vmem:[%s265] sm:$0xf]
        %v317 = vld [vmem:[%s265 + $0x4] sm:$0xf]
        %v318 = vld [vmem:[%s265 + $0x8] sm:$0xf]
        %v319 = vld [vmem:[%s265 + $0xc] sm:$0xf]
        %v320 = vld [vmem:[%s265 + $0x10] sm:$0xf]
        %v321 = vld [vmem:[%s265 + $0x14] sm:$0xf]
        %v322 = vld [vmem:[%s265 + $0x18] sm:$0xf]
        %v323 = vld [vmem:[%s265 + $0x1c] sm:$0xf]
        %v324 = vld [vmem:[%s265 + $0x20] sm:$0xf]
        %v325 = vld [vmem:[%s265 + $0x24] sm:$0xf]
        %v326 = vld [vmem:[%s265 + $0x28] sm:$0xf]
        %v327 = vld [vmem:[%s265 + $0x2c] sm:$0xf]
        %v328 = vld [vmem:[%s265 + $0x30] sm:$0xf]
        %v329 = vld [vmem:[%s265 + $0x34] sm:$0xf]
        %v330 = vld [vmem:[%s265 + $0x38] sm:$0xf]
        %v331 = vld [vmem:[%s265 + $0x3c] sm:$0xf]
        %v332 = vld [vmem:[#allocation5] sm:$0xf]
        %v333 = vld [vmem:[#allocation5 + $0x4] sm:$0xf]
        %v334 = vld [vmem:[#allocation5 + $0x8] sm:$0xf]
        %v335 = vld [vmem:[#allocation5 + $0xc] sm:$0xf]
        %v336 = vld [vmem:[#allocation5 + $0x10] sm:$0xf]
        %v337 = vld [vmem:[#allocation5 + $0x14] sm:$0xf]
        %v338 = vld [vmem:[#allocation5 + $0x18] sm:$0xf]
        %v339 = vld [vmem:[#allocation5 + $0x1c] sm:$0xf]
        %v340 = vld [vmem:[#allocation5 + $0x20] sm:$0xf]
        %v341 = vld [vmem:[#allocation5 + $0x24] sm:$0xf]
        %v342 = vld [vmem:[#allocation5 + $0x28] sm:$0xf]
        %v343 = vld [vmem:[#allocation5 + $0x2c] sm:$0xf]
        %v344 = vld [vmem:[#allocation5 + $0x30] sm:$0xf]
        %v345 = vld [vmem:[#allocation5 + $0x34] sm:$0xf]
        %v346 = vld [vmem:[#allocation5 + $0x38] sm:$0xf]
        %v347 = vld [vmem:[#allocation5 + $0x3c] sm:$0xf]
        %v348 = vld [vmem:[%s3] sm:$0x1]
        %v350 = vlaneseq
        %v351 = vshrl.u32 %v350, 7
        %v352 = vsub.s32 0, %v351
        %v353 = vrot.slane %v348, %v352
        %v371 = vunpack.c.l.b16 %v316
        %v372 = vunpack.c.l.b16 %v317
        %v373 = vunpack.c.l.b16 %v318
        %v374 = vunpack.c.l.b16 %v319
        %v375 = vunpack.c.l.b16 %v320
        %v376 = vunpack.c.l.b16 %v321
        %v377 = vunpack.c.l.b16 %v322
        %v378 = vunpack.c.l.b16 %v323
        %v379 = vunpack.c.l.b16 %v324
        %v380 = vunpack.c.l.b16 %v325
        %v381 = vunpack.c.l.b16 %v326
        %v382 = vunpack.c.l.b16 %v327
        %v383 = vunpack.c.l.b16 %v328
        %v384 = vunpack.c.l.b16 %v329
        %v385 = vunpack.c.l.b16 %v330
        %v386 = vunpack.c.l.b16 %v331
        %v387 = vpack.c.b16 %v372, %v371
        %v388 = vpack.c.b16 %v374, %v373
        %v389 = vpack.c.b16 %v376, %v375
        %v390 = vpack.c.b16 %v378, %v377
        %v391 = vpack.c.b16 %v380, %v379
        %v392 = vpack.c.b16 %v382, %v381
        %v393 = vpack.c.b16 %v384, %v383
        %v394 = vpack.c.b16 %v386, %v385
        %v419 = vunpack.c.l.b16 %v332
        %v420 = vunpack.c.l.b16 %v333
        %v421 = vunpack.c.l.b16 %v334
        %v422 = vunpack.c.l.b16 %v335
        %v423 = vunpack.c.l.b16 %v336
        %v424 = vunpack.c.l.b16 %v337
        %v425 = vunpack.c.l.b16 %v338
        %v426 = vunpack.c.l.b16 %v339
        %v427 = vunpack.c.l.b16 %v340
        %v428 = vunpack.c.l.b16 %v341
        %v429 = vunpack.c.l.b16 %v342
        %v430 = vunpack.c.l.b16 %v343
        %v431 = vunpack.c.l.b16 %v344
        %v432 = vunpack.c.l.b16 %v345
        %v433 = vunpack.c.l.b16 %v346
        %v434 = vunpack.c.l.b16 %v347
        %v435 = vpack.c.b16 %v420, %v419
        %v436 = vpack.c.b16 %v422, %v421
        %v437 = vpack.c.b16 %v424, %v423
        %v438 = vpack.c.b16 %v426, %v425
        %v439 = vpack.c.b16 %v428, %v427
        %v440 = vpack.c.b16 %v430, %v429
        %v441 = vpack.c.b16 %v432, %v431
        %v442 = vpack.c.b16 %v434, %v433
        %451 = vmatprep.subr.bf16.mxu0 0
        %452 = vmatpush1.bf16.msra.mxu0 %v435
        %453 = vmatprep.subr.bf16.mxu0 0
        %454 = vmatpush1.bf16.msra.mxu0 %v436
        %455 = vmatprep.subr.bf16.mxu0 0
        %456 = vmatpush1.bf16.msra.mxu0 %v437
        %457 = vmatprep.subr.bf16.mxu0 0
        %458 = vmatpush1.bf16.msra.mxu0 %v438
        %459 = vmatprep.subr.bf16.mxu0 0
        %460 = vmatpush1.bf16.msra.mxu0 %v439
        %461 = vmatprep.subr.bf16.mxu0 0
        %462 = vmatpush1.bf16.msra.mxu0 %v440
        %463 = vmatprep.subr.bf16.mxu0 0
        %464 = vmatpush1.bf16.msra.mxu0 %v441
        %465 = vmatprep.subr.bf16.mxu0 0
        %466 = vmatpush1.bf16.msra.mxu0 %v442
        %467 = vmatprep.subr.bf16.mxu0 0
        %468 = vmatpush1.bf16.msra.mxu0 0
        %469 = vmatprep.subr.bf16.mxu0 0
        %470 = vmatpush1.bf16.msra.mxu0 0
        %471 = vmatprep.subr.bf16.mxu0 0
        %472 = vmatpush1.bf16.msra.mxu0 0
        %473 = vmatprep.subr.bf16.mxu0 0
        %474 = vmatpush1.bf16.msra.mxu0 0
        %475 = vmatprep.subr.bf16.mxu0 0
        %476 = vmatpush1.bf16.msra.mxu0 0
        %477 = vmatprep.subr.bf16.mxu0 0
        %478 = vmatpush1.bf16.msra.mxu0 0
        %479 = vmatprep.subr.bf16.mxu0 0
        %480 = vmatpush1.bf16.msra.mxu0 0
        %481 = vmatprep.subr.bf16.mxu0 0
        %482 = vmatpush1.bf16.msra.mxu0 0
        %483 = vmatprep.mubr.bf16.mxu0 0
        %484 = vmatmul.mubr.bf16.gmra.mrb[0].mxu0 %v387
        %v485 = vpop.f32.mrb[0].mxu0
        %v486 = vadd.f32 %v353, %v485
        %v487 = vpop.f32.mrb[0].mxu0
        %v488 = vpop.f32.mrb[0].mxu0
        %v489 = vadd.f32 %v353, %v488
        %v490 = vpop.f32.mrb[0].mxu0
        %491 = vmatprep.mubr.bf16.mxu0 0
        %492 = vmatmul.mubr.bf16.gmra.mrb[0].mxu0 %v388
        %v493 = vpop.f32.mrb[0].mxu0
        %v494 = vadd.f32 %v353, %v493
        %v495 = vpop.f32.mrb[0].mxu0
        %v496 = vpop.f32.mrb[0].mxu0
        %v497 = vadd.f32 %v353, %v496
        %v498 = vpop.f32.mrb[0].mxu0
        %499 = vmatprep.mubr.bf16.mxu0 0
        %500 = vmatmul.mubr.bf16.gmra.mrb[0].mxu0 %v389
        %v501 = vpop.f32.mrb[0].mxu0
        %v502 = vadd.f32 %v353, %v501
        %v503 = vpop.f32.mrb[0].mxu0
        %v504 = vpop.f32.mrb[0].mxu0
        %v505 = vadd.f32 %v353, %v504
        %v506 = vpop.f32.mrb[0].mxu0
        %507 = vmatprep.mubr.bf16.mxu0 0
        %508 = vmatmul.mubr.bf16.gmra.mrb[0].mxu0 %v390
        %v509 = vpop.f32.mrb[0].mxu0
        %v510 = vadd.f32 %v353, %v509
        %v511 = vpop.f32.mrb[0].mxu0
        %v512 = vpop.f32.mrb[0].mxu0
        %v513 = vadd.f32 %v353, %v512
        %v514 = vpop.f32.mrb[0].mxu0
        %515 = vmatprep.mubr.bf16.mxu0 0
        %516 = vmatmul.mubr.bf16.gmra.mrb[0].mxu0 %v391
        %v517 = vpop.f32.mrb[0].mxu0
        %v518 = vadd.f32 %v353, %v517
        %v519 = vpop.f32.mrb[0].mxu0
        %v520 = vpop.f32.mrb[0].mxu0
        %v521 = vadd.f32 %v353, %v520
        %v522 = vpop.f32.mrb[0].mxu0
        %523 = vmatprep.mubr.bf16.mxu0 0
        %524 = vmatmul.mubr.bf16.gmra.mrb[0].mxu0 %v392
        %v525 = vpop.f32.mrb[0].mxu0
        %v526 = vadd.f32 %v353, %v525
        %v527 = vpop.f32.mrb[0].mxu0
        %v528 = vpop.f32.mrb[0].mxu0
        %v529 = vadd.f32 %v353, %v528
        %v530 = vpop.f32.mrb[0].mxu0
        %531 = vmatprep.mubr.bf16.mxu0 0
        %532 = vmatmul.mubr.bf16.gmra.mrb[0].mxu0 %v393
        %v533 = vpop.f32.mrb[0].mxu0
        %v534 = vadd.f32 %v353, %v533
        %v535 = vpop.f32.mrb[0].mxu0
        %v536 = vpop.f32.mrb[0].mxu0
        %v537 = vadd.f32 %v353, %v536
        %v538 = vpop.f32.mrb[0].mxu0
        %539 = vmatprep.mubr.bf16.mxu0 0
        %540 = vmatmul.mubr.bf16.gmra.mrb[0].mxu0 %v394
        %v541 = vpop.f32.mrb[0].mxu0
        %v542 = vadd.f32 %v353, %v541
        %v543 = vpop.f32.mrb[0].mxu0
        %v544 = vpop.f32.mrb[0].mxu0
        %v545 = vadd.f32 %v353, %v544
        %v546 = vpop.f32.mrb[0].mxu0
        %547 = vdwg.mxu0
        %v548 = vtanh.pop %v486
        %v549 = vtanh.pop %v489
        %v550 = vtanh.pop %v494
        %v551 = vtanh.pop %v497
        %v552 = vtanh.pop %v502
        %v553 = vtanh.pop %v505
        %v554 = vtanh.pop %v510
        %v555 = vtanh.pop %v513
        %v556 = vtanh.pop %v518
        %v557 = vtanh.pop %v521
        %v558 = vtanh.pop %v526
        %v559 = vtanh.pop %v529
        %v560 = vtanh.pop %v534
        %v561 = vtanh.pop %v537
        %v562 = vtanh.pop %v542
        %v563 = vtanh.pop %v545
        %v564 = vld [vmem:[%s4] sm:$0x1]
        %v566 = vlaneseq
        %v567 = vshrl.u32 %v566, 7
        %v568 = vsub.s32 0, %v567
        %v569 = vrot.slane %v564, %v568
        %v571 = vmul.f32 %v548, %v569
        %v572 = vmul.f32 %v549, %v569
        %v573 = vmul.f32 %v550, %v569
        %v574 = vmul.f32 %v551, %v569
        %v575 = vmul.f32 %v552, %v569
        %v576 = vmul.f32 %v553, %v569
        %v577 = vmul.f32 %v554, %v569
        %v578 = vmul.f32 %v555, %v569
        %v579 = vmul.f32 %v556, %v569
        %v580 = vmul.f32 %v557, %v569
        %v581 = vmul.f32 %v558, %v569
        %v582 = vmul.f32 %v559, %v569
        %v583 = vmul.f32 %v560, %v569
        %v584 = vmul.f32 %v561, %v569
        %v585 = vmul.f32 %v562, %v569
        %v586 = vmul.f32 %v563, %v569
        %587 = vadd.xlane.f32.xlu0 %v571
        %v588 = vpop.xlane.xlu0 %587
        %589 = vadd.xlane.f32.xlu0 %v572
        %v590 = vpop.xlane.xlu0 %589
        %591 = vadd.xlane.f32.xlu0 %v573
        %v592 = vpop.xlane.xlu0 %591
        %593 = vadd.xlane.f32.xlu0 %v574
        %v594 = vpop.xlane.xlu0 %593
        %595 = vadd.xlane.f32.xlu0 %v575
        %v596 = vpop.xlane.xlu0 %595
        %597 = vadd.xlane.f32.xlu0 %v576
        %v598 = vpop.xlane.xlu0 %597
        %599 = vadd.xlane.f32.xlu0 %v577
        %v600 = vpop.xlane.xlu0 %599
        %601 = vadd.xlane.f32.xlu0 %v578
        %v602 = vpop.xlane.xlu0 %601
        %603 = vadd.xlane.f32.xlu0 %v579
        %v604 = vpop.xlane.xlu0 %603
        %605 = vadd.xlane.f32.xlu0 %v580
        %v606 = vpop.xlane.xlu0 %605
        %607 = vadd.xlane.f32.xlu0 %v581
        %v608 = vpop.xlane.xlu0 %607
        %609 = vadd.xlane.f32.xlu0 %v582
        %v610 = vpop.xlane.xlu0 %609
        %611 = vadd.xlane.f32.xlu0 %v583
        %v612 = vpop.xlane.xlu0 %611
        %613 = vadd.xlane.f32.xlu0 %v584
        %v614 = vpop.xlane.xlu0 %613
        %615 = vadd.xlane.f32.xlu0 %v585
        %v616 = vpop.xlane.xlu0 %615
        %617 = vadd.xlane.f32.xlu0 %v586
        %v618 = vpop.xlane.xlu0 %617
        %v619 = vld [vmem:[%s310] sm:$0xff]
        %vm620 = vcmp.eq.f32.partialorder %v619, 0.0
        %v637 = vlaneseq
        %v638 = vand.u32 %v637, 127
        %v639 = vlaneseq
        %v640 = vshrl.u32 %v639, 7
        %v641 = vsub.s32 %v638, %v640
        %v642 = vrot.slane %v588, %v641
        %v643 = vadd.s32 %v638, 4294967288
        %v644 = vlaneseq
        %v645 = vshrl.u32 %v644, 7
        %v646 = vsub.s32 %v643, %v645
        %v647 = vrot.slane %v590, %v646
        %vm648 = vcmask 130112
        %v649 = vsel %vm648, %v647, %v642
        %v650 = vlaneseq
        %v651 = vshrl.u32 %v650, 7
        %v652 = vsub.s32 %v638, %v651
        %v653 = vrot.slane %v592, %v652
        %v654 = vlaneseq
        %v655 = vshrl.u32 %v654, 7
        %v656 = vsub.s32 %v643, %v655
        %v657 = vrot.slane %v594, %v656
        %v658 = vsel %vm648, %v657, %v653
        %v659 = vlaneseq
        %v660 = vshrl.u32 %v659, 7
        %v661 = vsub.s32 %v638, %v660
        %v662 = vrot.slane %v596, %v661
        %v663 = vlaneseq
        %v664 = vshrl.u32 %v663, 7
        %v665 = vsub.s32 %v643, %v664
        %v666 = vrot.slane %v598, %v665
        %v667 = vsel %vm648, %v666, %v662
        %v668 = vlaneseq
        %v669 = vshrl.u32 %v668, 7
        %v670 = vsub.s32 %v638, %v669
        %v671 = vrot.slane %v600, %v670
        %v672 = vlaneseq
        %v673 = vshrl.u32 %v672, 7
        %v674 = vsub.s32 %v643, %v673
        %v675 = vrot.slane %v602, %v674
        %v676 = vsel %vm648, %v675, %v671
        %v677 = vlaneseq
        %v678 = vshrl.u32 %v677, 7
        %v679 = vsub.s32 %v638, %v678
        %v680 = vrot.slane %v604, %v679
        %v681 = vlaneseq
        %v682 = vshrl.u32 %v681, 7
        %v683 = vsub.s32 %v643, %v682
        %v684 = vrot.slane %v606, %v683
        %v685 = vsel %vm648, %v684, %v680
        %v686 = vlaneseq
        %v687 = vshrl.u32 %v686, 7
        %v688 = vsub.s32 %v638, %v687
        %v689 = vrot.slane %v608, %v688
        %v690 = vlaneseq
        %v691 = vshrl.u32 %v690, 7
        %v692 = vsub.s32 %v643, %v691
        %v693 = vrot.slane %v610, %v692
        %v694 = vsel %vm648, %v693, %v689
        %v695 = vlaneseq
        %v696 = vshrl.u32 %v695, 7
        %v697 = vsub.s32 %v638, %v696
        %v698 = vrot.slane %v612, %v697
        %v699 = vlaneseq
        %v700 = vshrl.u32 %v699, 7
        %v701 = vsub.s32 %v643, %v700
        %v702 = vrot.slane %v614, %v701
        %v703 = vsel %vm648, %v702, %v698
        %v704 = vlaneseq
        %v705 = vshrl.u32 %v704, 7
        %v706 = vsub.s32 %v638, %v705
        %v707 = vrot.slane %v616, %v706
        %v708 = vlaneseq
        %v709 = vshrl.u32 %v708, 7
        %v710 = vsub.s32 %v643, %v709
        %v711 = vrot.slane %v618, %v710
        %v712 = vsel %vm648, %v711, %v707
        %vm713 = vcmask 1041409
        %v714 = vsel %vm713, %v658, %v649
        %vm715 = vcmask 1042434
        %v716 = vsel %vm715, %v667, %v714
        %vm717 = vcmask 1043459
        %v718 = vsel %vm717, %v676, %v716
        %vm719 = vcmask 1044484
        %v720 = vsel %vm719, %v685, %v718
        %vm721 = vcmask 1045509
        %v722 = vsel %vm721, %v694, %v720
        %vm723 = vcmask 1046534
        %v724 = vsel %vm723, %v703, %v722
        %vm725 = vcmask 1047559
        %v726 = vsel %vm725, %v712, %v724
        %v728 = vsel %vm620, -1e+09, %v726
        %vm729 = vcmask 130048
        %v730 = vsel %vm729, %v728, -inf
        %731 = vmax.xlane.f32.xlu0 %v730
        %v732 = vpop.xlane.xlu0 %731
        %v733 = vsub.f32 %v728, %v732
        %v734 = vmul.f32 %v733, 1.442695
        %v735 = vpow.pop %v734
        %v736 = vsel %vm729, %v735, 0.0
        %737 = vadd.xlane.f32.xlu0 %v736
        %v738 = vpop.xlane.xlu0 %737
        %v739 = vrcp.pop %v738
        %v740 = vmul.f32 %v735, %v739
        %v741 = vunpack.c.l.bf16 %v316
        %v742 = vunpack.c.l.bf16 %v317
        %v743 = vunpack.c.l.bf16 %v318
        %v744 = vunpack.c.l.bf16 %v319
        %v745 = vunpack.c.l.bf16 %v320
        %v746 = vunpack.c.l.bf16 %v321
        %v747 = vunpack.c.l.bf16 %v322
        %v748 = vunpack.c.l.bf16 %v323
        %v749 = vunpack.c.l.bf16 %v324
        %v750 = vunpack.c.l.bf16 %v325
        %v751 = vunpack.c.l.bf16 %v326
        %v752 = vunpack.c.l.bf16 %v327
        %v753 = vunpack.c.l.bf16 %v328
        %v754 = vunpack.c.l.bf16 %v329
        %v755 = vunpack.c.l.bf16 %v330
        %v756 = vunpack.c.l.bf16 %v331
        %v757 = vlaneseq
        %v758 = vshrl.u32 %v757, 7
        %v759 = vsub.s32 0, %v758
        %v760 = vrot.slane %v740, %v759
        %762 = vbcast.lane.b32.xlu0 %v760, 256
        %v763 = vpop.permute.xlu0 %762
        %s765 = sor.u32 256, 8
        %766 = vbcast.lane.b32.xlu0 %v760, %s765
        %v767 = vpop.permute.xlu0 %766
        %v768 = vlaneseq
        %v769 = vshrl.u32 %v768, 7
        %v770 = vsub.s32 1, %v769
        %v771 = vrot.slane %v740, %v770
        %773 = vbcast.lane.b32.xlu0 %v771, 256
        %v774 = vpop.permute.xlu0 %773
        %s776 = sor.u32 256, 8
        %777 = vbcast.lane.b32.xlu0 %v771, %s776
        %v778 = vpop.permute.xlu0 %777
        %v779 = vlaneseq
        %v780 = vshrl.u32 %v779, 7
        %v781 = vsub.s32 2, %v780
        %v782 = vrot.slane %v740, %v781
        %784 = vbcast.lane.b32.xlu0 %v782, 256
        %v785 = vpop.permute.xlu0 %784
        %s787 = sor.u32 256, 8
        %788 = vbcast.lane.b32.xlu0 %v782, %s787
        %v789 = vpop.permute.xlu0 %788
        %v790 = vlaneseq
        %v791 = vshrl.u32 %v790, 7
        %v792 = vsub.s32 3, %v791
        %v793 = vrot.slane %v740, %v792
        %795 = vbcast.lane.b32.xlu0 %v793, 256
        %v796 = vpop.permute.xlu0 %795
        %s798 = sor.u32 256, 8
        %799 = vbcast.lane.b32.xlu0 %v793, %s798
        %v800 = vpop.permute.xlu0 %799
        %v801 = vlaneseq
        %v802 = vshrl.u32 %v801, 7
        %v803 = vsub.s32 4, %v802
        %v804 = vrot.slane %v740, %v803
        %806 = vbcast.lane.b32.xlu0 %v804, 256
        %v807 = vpop.permute.xlu0 %806
        %s809 = sor.u32 256, 8
        %810 = vbcast.lane.b32.xlu0 %v804, %s809
        %v811 = vpop.permute.xlu0 %810
        %v812 = vlaneseq
        %v813 = vshrl.u32 %v812, 7
        %v814 = vsub.s32 5, %v813
        %v815 = vrot.slane %v740, %v814
        %817 = vbcast.lane.b32.xlu0 %v815, 256
        %v818 = vpop.permute.xlu0 %817
        %s820 = sor.u32 256, 8
        %821 = vbcast.lane.b32.xlu0 %v815, %s820
        %v822 = vpop.permute.xlu0 %821
        %v823 = vlaneseq
        %v824 = vshrl.u32 %v823, 7
        %v825 = vsub.s32 6, %v824
        %v826 = vrot.slane %v740, %v825
        %828 = vbcast.lane.b32.xlu0 %v826, 256
        %v829 = vpop.permute.xlu0 %828
        %s831 = sor.u32 256, 8
        %832 = vbcast.lane.b32.xlu0 %v826, %s831
        %v833 = vpop.permute.xlu0 %832
        %v834 = vlaneseq
        %v835 = vshrl.u32 %v834, 7
        %v836 = vsub.s32 7, %v835
        %v837 = vrot.slane %v740, %v836
        %839 = vbcast.lane.b32.xlu0 %v837, 256
        %v840 = vpop.permute.xlu0 %839
        %s842 = sor.u32 256, 8
        %843 = vbcast.lane.b32.xlu0 %v837, %s842
        %v844 = vpop.permute.xlu0 %843
        %v845 = vmul.f32 %v763, %v741
        %v846 = vmul.f32 %v767, %v742
        %v847 = vmul.f32 %v774, %v743
        %v848 = vmul.f32 %v778, %v744
        %v849 = vmul.f32 %v785, %v745
        %v850 = vmul.f32 %v789, %v746
        %v851 = vmul.f32 %v796, %v747
        %v852 = vmul.f32 %v800, %v748
        %v853 = vmul.f32 %v807, %v749
        %v854 = vmul.f32 %v811, %v750
        %v855 = vmul.f32 %v818, %v751
        %v856 = vmul.f32 %v822, %v752
        %v857 = vmul.f32 %v829, %v753
        %v858 = vmul.f32 %v833, %v754
        %v859 = vmul.f32 %v840, %v755
        %v860 = vmul.f32 %v844, %v756
        %v861 = vadd.f32 %v845, %v846
        %v862 = vrot.slane %v861, 4
        %v863 = vadd.f32 %v861, %v862
        %v864 = vrot.slane %v863, 2
        %v865 = vadd.f32 %v863, %v864
        %v866 = vrot.slane %v865, 1
        %v867 = vadd.f32 %v865, %v866
        %v868 = vadd.f32 %v847, %v848
        %v869 = vrot.slane %v868, 4
        %v870 = vadd.f32 %v868, %v869
        %v871 = vrot.slane %v870, 2
        %v872 = vadd.f32 %v870, %v871
        %v873 = vrot.slane %v872, 1
        %v874 = vadd.f32 %v872, %v873
        %v875 = vadd.f32 %v849, %v850
        %v876 = vrot.slane %v875, 4
        %v877 = vadd.f32 %v875, %v876
        %v878 = vrot.slane %v877, 2
        %v879 = vadd.f32 %v877, %v878
        %v880 = vrot.slane %v879, 1
        %v881 = vadd.f32 %v879, %v880
        %v882 = vadd.f32 %v851, %v852
        %v883 = vrot.slane %v882, 4
        %v884 = vadd.f32 %v882, %v883
        %v885 = vrot.slane %v884, 2
        %v886 = vadd.f32 %v884, %v885
        %v887 = vrot.slane %v886, 1
        %v888 = vadd.f32 %v886, %v887
        %v889 = vadd.f32 %v853, %v854
        %v890 = vrot.slane %v889, 4
        %v891 = vadd.f32 %v889, %v890
        %v892 = vrot.slane %v891, 2
        %v893 = vadd.f32 %v891, %v892
        %v894 = vrot.slane %v893, 1
        %v895 = vadd.f32 %v893, %v894
        %v896 = vadd.f32 %v855, %v856
        %v897 = vrot.slane %v896, 4
        %v898 = vadd.f32 %v896, %v897
        %v899 = vrot.slane %v898, 2
        %v900 = vadd.f32 %v898, %v899
        %v901 = vrot.slane %v900, 1
        %v902 = vadd.f32 %v900, %v901
        %v903 = vadd.f32 %v857, %v858
        %v904 = vrot.slane %v903, 4
        %v905 = vadd.f32 %v903, %v904
        %v906 = vrot.slane %v905, 2
        %v907 = vadd.f32 %v905, %v906
        %v908 = vrot.slane %v907, 1
        %v909 = vadd.f32 %v907, %v908
        %v910 = vadd.f32 %v859, %v860
        %v911 = vrot.slane %v910, 4
        %v912 = vadd.f32 %v910, %v911
        %v913 = vrot.slane %v912, 2
        %v914 = vadd.f32 %v912, %v913
        %v915 = vrot.slane %v914, 1
        %v916 = vadd.f32 %v914, %v915
        %v925 = vsel %vm713, %v874, %v867
        %v926 = vsel %vm715, %v881, %v925
        %v927 = vsel %vm717, %v888, %v926
        %v928 = vsel %vm719, %v895, %v927
        %v929 = vsel %vm721, %v902, %v928
        %v930 = vsel %vm723, %v909, %v929
        %v931 = vsel %vm725, %v916, %v930
        %933 = vst [vmem:[%s299] sm:$0xff] %v931
        %934 = vst.msk [vmem:[%s314] sm:$0xff] %vm729, %v740
        %s935 = sand.u32 %s148, 1
        %s936 = scalar_lea.sflag [#allocation4], %s935
        %s937 = sand.u32 %s148, 1
        %s938 = smul.addr %s937, 8
        %s939 = scalar_lea.vmem [#allocation7], %s938
        %p940 = scmp.lt.s32.totalorder %s25, 3
        %s941 = scalar_select %p940, %s25, 3
        %s942 = smul.addr %s941, 8
        %s943 = scalar_lea.vmem %s6, %s942
        // Predicated region
        $region49: #{tpu_custom_call.1} parent=39 // pred_check
          %p944 = pneg %p158
        $region50: #{tpu_custom_call.1} parent=39 // pred_check_branch
          %946 = sbr.rel (%p944) target = $region52
        $region51: #{tpu_custom_call.1} parent=39 // pred_region
          %s948 = ssub.s32 128, 128
          %949 = vsyncadd %s936, %s948
          %s950 = smul.addr %s25, 128
          %s951 = scalar_lea.hbm %s5, %s950
          %s953 = sshll.u32 %s939, 4
          %s954 = int_to_ptr.vmem [resolvable:$true] %s953
          %956 = dma.vmem_to_hbm [thread:$0]  %s954, 128, %s951, %s936
        $region52: #{tpu_custom_call.1} parent=39 // pred_fallthru
          _
        // Predicated region
        $region53: #{tpu_custom_call.1} parent=39 // pred_check
          %p957 = pneg %p184
        $region54: #{tpu_custom_call.1} parent=39 // pred_check_branch
          %959 = sbr.rel (%p957) target = $region56
        $region55: #{tpu_custom_call.1} parent=39 // pred_region
          _
        $region56: #{tpu_custom_call.1} parent=39 // pred_fallthru
          _
      $region40: #{tpu_custom_call.1} parent=5 // pred_fallthru
        _
      %p960 = scmp.le.s32.totalorder 2, %s20
      // Predicated region
      $region57: #{tpu_custom_call.1} parent=5 // pred_check
        %p961 = pneg %p960
      $region58: #{tpu_custom_call.1} parent=5 // pred_check_branch
        %963 = sbr.rel (%p961) target = $region60
      $region59: #{tpu_custom_call.1} parent=5 // pred_region
        %s964 = ssub.s32 %s20, 2
        // Predicated region
        $region61: #{tpu_custom_call.1} parent=59 // pred_check
          %p965 = pneg %p164
        $region62: #{tpu_custom_call.1} parent=59 // pred_check_branch
          %967 = sbr.rel (%p965) target = $region64
        $region63: #{tpu_custom_call.1} parent=59 // pred_region
          %s968 = sand.u32 %s149, 1
          %s969 = scalar_lea.sflag [#allocation4], %s968
          %s970 = sand.u32 %s149, 1
          %s971 = smul.addr %s970, 8
          %s972 = scalar_lea.vmem [#allocation7], %s971
          %973 = dma.done %s969, 128
        $region64: #{tpu_custom_call.1} parent=59 // pred_fallthru
          _
        // Predicated region
        $region65: #{tpu_custom_call.1} parent=59 // pred_check
          %p974 = pneg %p190
        $region66: #{tpu_custom_call.1} parent=59 // pred_check_branch
          %976 = sbr.rel (%p974) target = $region68
        $region67: #{tpu_custom_call.1} parent=59 // pred_region
          %p977 = scmp.lt.s32.totalorder %s26, 3
          %s978 = scalar_select %p977, %s26, 3
          %s979 = smul.addr %s978, 8
          %s980 = scalar_lea.vmem %s6, %s979
        $region68: #{tpu_custom_call.1} parent=59 // pred_fallthru
          _
      $region60: #{tpu_custom_call.1} parent=5 // pred_fallthru
        _
    $region6: #{tpu_custom_call.1} parent=1 // loop_footer
      %s24 = sadd.s32 1, %s20
    $region7: #{tpu_custom_call.1} parent=1 // loop_footer_branch
      %19 = sbr.rel target = $region3
    $region8: #{tpu_custom_call.1} parent=1 // loop_exit
      _
    %981 = vsyncpa [#allocation3], 1
    %s982 = scalar_lea.sflag [#allocation3], 1
    %983 = vsyncpa %s982, 1
    %984 = vsyncpa [#allocation6], 1
    %985 = vsyncpa [#allocation4], 1
    %s986 = scalar_lea.sflag [#allocation4], 1
    %987 = vsyncpa %s986, 1

</llo_original>
